<compile_context>
chip_gen: v5e
topology: v5e:2x2
jax: 0.10.0
libtpu: 0.0.40
codegen_flags: <defaults>
</compile_context>

<pallas_src>
import jax
import jax.numpy as jnp
import numpy as np
from jax.experimental import pallas as pl
from jax.experimental.pallas import tpu as pltpu

BN_EPS = 1e-5


def _siam_fused_kernel(x1_ref, x2_ref, wb_ref, w1_ref, gamma_ref, beta_ref,
                       w2_ref, z1_ref, z2_ref, p1_ref, p2_ref):
    """Grid: (K tiles,).  Both Siamese branches processed every step.

    x1_ref, x2_ref: (B, tk)  f32   activations, current K tile (cast to bf16 here)
    wb_ref:         (tk, C)  bf16  backbone weight K tile (streamed once)
    w1_ref:         (C, H)   bf16  projector fc1 weight (VMEM-resident)
    w2_ref:         (H, C)   bf16  projector fc2 weight (VMEM-resident)
    gamma/beta:     (1, H)   f32   BatchNorm1d affine parameters
    z1/z2_ref:      (B, C)   f32   backbone outputs; double as K accumulators
    p1/p2_ref:      (B, C)   f32   projector outputs (written at last K step)
    """
    k = pl.program_id(0)

    @pl.when(k == 0)
    def _():
        z1_ref[...] = jnp.zeros_like(z1_ref)
        z2_ref[...] = jnp.zeros_like(z2_ref)

    # Backbone: flatten + Linear(D -> C, bias=False).  bf16 MXU operands with
    # f32 accumulation directly into the VMEM-resident output refs.
    wb = wb_ref[...]
    z1_ref[...] += jnp.dot(x1_ref[...].astype(jnp.bfloat16), wb,
                           preferred_element_type=jnp.float32)
    z2_ref[...] += jnp.dot(x2_ref[...].astype(jnp.bfloat16), wb,
                           preferred_element_type=jnp.float32)

    @pl.when(k == pl.num_programs(0) - 1)
    def _():
        w1 = w1_ref[...]
        w2 = w2_ref[...]
        gamma = gamma_ref[...]
        beta = beta_ref[...]

        def projector(z):
            # Linear -> BatchNorm1d (per-branch train-mode batch stats, biased
            # variance, eps=1e-5) -> ReLU -> Linear.  VPU math stays f32.
            h = jnp.dot(z.astype(jnp.bfloat16), w1,
                        preferred_element_type=jnp.float32)         # (B, H)
            mean = jnp.mean(h, axis=0, keepdims=True)               # (1, H)
            cen = h - mean
            var = jnp.mean(cen * cen, axis=0, keepdims=True)        # (1, H)
            scale = gamma * jax.lax.rsqrt(var + BN_EPS)             # fold gamma
            h_act = jnp.maximum(cen * scale + beta, 0.0)            # BN + ReLU
            return jnp.dot(h_act.astype(jnp.bfloat16), w2,
                           preferred_element_type=jnp.float32)      # (B, C)

        p1_ref[...] = projector(z1_ref[...])
        p2_ref[...] = projector(z2_ref[...])


def _pick_tk(d, b, c, vmem_budget_bytes=8 * 1024 * 1024):
    """Largest 128-multiple K tile that divides D under a VMEM budget.

    Per K column the pipeline holds two double-buffered f32 x tiles (B, tk)
    plus one double-buffered bf16 wb tile (tk, C).
    """
    if d % 128 != 0:
        return d                                   # irregular D: one full-width K step
    bytes_per_k_col = 2 * (2 * b * 4 + c * 2)      # 2 pipeline buffers each
    cap = max(128, (vmem_budget_bytes // bytes_per_k_col) // 128 * 128)
    tk = min(d, cap)
    while d % tk != 0:                             # terminates: 128 divides d
        tk -= 128
    return tk


def _siam_fused(x1_flat, x2_flat, wb, w1, gamma, beta, w2, *, k_tile=None):
    """x1_flat/x2_flat: (B, D) f32.  Returns (z1, z2, p1, p2), each (B, C) f32."""
    B, D = x1_flat.shape
    C = wb.shape[1]
    H = w1.shape[1]
    tk = _pick_tk(D, B, C) if k_tile is None else k_tile
    assert D % tk == 0, f"K tile {tk} must divide D={D}"
    nk = D // tk

    flops = 2 * 2 * B * D * C + 2 * (2 * B * C * H + 2 * B * H * C)
    bytes_accessed = (2 * B * D * 4            # x1, x2 (f32)
                      + D * C * 2              # wb (bf16)
                      + (C * H + H * C) * 2    # w1, w2 (bf16)
                      + 2 * H * 4              # gamma, beta (f32)
                      + 4 * B * C * 4)         # z1, z2, p1, p2 (f32)

    out_sds = jax.ShapeDtypeStruct((B, C), jnp.float32)
    out_block = pl.BlockSpec((B, C), lambda k: (0, 0))   # resident across K

    return pl.pallas_call(
        _siam_fused_kernel,
        out_shape=(out_sds, out_sds, out_sds, out_sds),
        grid_spec=pltpu.PrefetchScalarGridSpec(
            num_scalar_prefetch=0,
            grid=(nk,),
            in_specs=[
                pl.BlockSpec((B, tk), lambda k: (0, k)),   # x1 (f32, K-tiled)
                pl.BlockSpec((B, tk), lambda k: (0, k)),   # x2 (f32, K-tiled)
                pl.BlockSpec((tk, C), lambda k: (k, 0)),   # wb (bf16, K-tiled, streamed once)
                pl.BlockSpec((C, H), lambda k: (0, 0)),    # w1 (resident)
                pl.BlockSpec((1, H), lambda k: (0, 0)),    # gamma (resident)
                pl.BlockSpec((1, H), lambda k: (0, 0)),    # beta (resident)
                pl.BlockSpec((H, C), lambda k: (0, 0)),    # w2 (resident)
            ],
            out_specs=(out_block, out_block, out_block, out_block),
        ),
        compiler_params=pltpu.CompilerParams(
            dimension_semantics=("arbitrary",),        # K is a reduction axis
            vmem_limit_bytes=32 * 1024 * 1024,         # fits v7x's 64 MiB VMEM
        ),
        cost_estimate=pl.CostEstimate(flops=flops, transcendentals=2 * H,
                                      bytes_accessed=bytes_accessed),
    )(x1_flat, x2_flat, wb, w1, gamma, beta, w2)


def siam_ul_forward(params, x1, x2, *, k_tile=None):
    """Mirrors SiamUL.forward: returns (p1, p2, z1, z2, z1.detach(), z2.detach())."""
    B = x1.shape[0]
    # Backbone flatten stage; x stays f32 in HBM (no wrapper-side bf16 copy).
    x1_flat = x1.reshape(B, -1)
    x2_flat = x2.reshape(B, -1)
    z1, z2, p1, p2 = _siam_fused(x1_flat, x2_flat, params["wb"], params["w1"],
                                 params["gamma"], params["beta"], params["w2"],
                                 k_tile=k_tile)
    return (p1, p2, z1, z2,
            jax.lax.stop_gradient(z1), jax.lax.stop_gradient(z2))


def init_params(key, in_features, num_classes, hidden_dim):
    k_b, k_1, k_2 = jax.random.split(key, 3)
    # Deterministic synthetic init (scaled normal), stored (in, out).
    # Matmul weights kept in bf16 (MXU operands read straight from HBM);
    # BatchNorm affine parameters in f32.
    wb = (jax.random.normal(k_b, (in_features, num_classes), jnp.float32)
          * 0.02).astype(jnp.bfloat16)
    w1 = (jax.random.normal(k_1, (num_classes, hidden_dim), jnp.float32)
          * 0.1).astype(jnp.bfloat16)
    w2 = (jax.random.normal(k_2, (hidden_dim, num_classes), jnp.float32)
          * 0.1).astype(jnp.bfloat16)
    gamma = jnp.ones((1, hidden_dim), jnp.float32)   # BatchNorm1d.weight init
    beta = jnp.zeros((1, hidden_dim), jnp.float32)   # BatchNorm1d.bias init
    return {"wb": wb, "w1": w1, "gamma": gamma, "beta": beta, "w2": w2}


def _reference_forward(params, x1, x2):
    """Pure-JAX reference using the same bf16-operand / f32-accumulate precision."""
    def backbone(x):
        xf = x.reshape(x.shape[0], -1).astype(jnp.bfloat16)
        return jnp.dot(xf, params["wb"], preferred_element_type=jnp.float32)

    def projector(z):
        h = jnp.dot(z.astype(jnp.bfloat16), params["w1"],
                    preferred_element_type=jnp.float32)
        mean = jnp.mean(h, axis=0, keepdims=True)
        var = jnp.mean((h - mean) ** 2, axis=0, keepdims=True)
        hn = (h - mean) * jax.lax.rsqrt(var + BN_EPS) * params["gamma"] + params["beta"]
        hn = jnp.maximum(hn, 0.0)
        return jnp.dot(hn.astype(jnp.bfloat16), params["w2"],
                       preferred_element_type=jnp.float32)

    z1, z2 = backbone(x1), backbone(x2)
    return projector(z1), projector(z2), z1, z2


if __name__ == "__main__":
    key = jax.random.PRNGKey(0)
    kx1, kx2, kp = jax.random.split(key, 3)

    B, Cin, Him, Wim = 8, 4, 16, 16
    num_classes, hidden_dim = 16, 64
    in_features = Cin * Him * Wim          # D = 1024

    x1 = jax.random.normal(kx1, (B, Cin, Him, Wim), jnp.float32)
    x2 = jax.random.normal(kx2, (B, Cin, Him, Wim), jnp.float32)
    params = init_params(kp, in_features, num_classes, hidden_dim)

    outs = jax.jit(siam_ul_forward)(params, x1, x2)
    outs = jax.block_until_ready(outs)
    p1, p2, z1, z2, z1_d, z2_d = outs

    # Shape / sanity checks.
    assert p1.shape == (B, num_classes) and p2.shape == (B, num_classes)
    assert z1.shape == (B, num_classes) and z2.shape == (B, num_classes)
    assert z1_d.shape == z1.shape and z2_d.shape == z2.shape
    assert all(bool(jnp.isfinite(o).all()) for o in (p1, p2, z1, z2))

    # Numerical check against a pure-JAX reference at matching precision.
    p1_r, p2_r, z1_r, z2_r = _reference_forward(params, x1, x2)
    for got, ref in ((z1, z1_r), (z2, z2_r), (p1, p1_r), (p2, p2_r)):
        np.testing.assert_allclose(np.asarray(got), np.asarray(ref),
                                   rtol=2e-2, atol=2e-2)

    # Exercise the multi-K-step accumulator path (tk forced below D).
    outs_kt = jax.jit(lambda p, a, b: siam_ul_forward(p, a, b, k_tile=256))(
        params, x1, x2)
    outs_kt = jax.block_until_ready(outs_kt)
    for got, ref in zip(outs_kt[:4], (p1, p2, z1, z2)):
        np.testing.assert_allclose(np.asarray(got), np.asarray(ref),
                                   rtol=1e-3, atol=1e-3)

    print("KERNEL_OK")
</pallas_src>

<mosaic_0001>
module attributes {stable_mosaic.version = 11 : i64} {
  func.func @_siam_fused_kernel(%arg0: i32, %arg1: memref<8x1024xf32, #tpu.memory_space<vmem>>, %arg2: memref<8x1024xf32, #tpu.memory_space<vmem>>, %arg3: memref<1024x16xbf16, #tpu.memory_space<vmem>>, %arg4: memref<16x64xbf16, #tpu.memory_space<vmem>>, %arg5: memref<1x64xf32, #tpu.memory_space<vmem>>, %arg6: memref<1x64xf32, #tpu.memory_space<vmem>>, %arg7: memref<64x16xbf16, #tpu.memory_space<vmem>>, %arg8: memref<8x16xf32, #tpu.memory_space<vmem>>, %arg9: memref<8x16xf32, #tpu.memory_space<vmem>>, %arg10: memref<8x16xf32, #tpu.memory_space<vmem>>, %arg11: memref<8x16xf32, #tpu.memory_space<vmem>>) attributes {dimension_semantics = [#tpu.dimension_semantics<arbitrary>], iteration_bounds = array<i64: 1>, scalar_prefetch = 0 : i64, scratch_operands = 0 : i64, tpu.core_type = #tpu.core_type<tc>, window_params = [{transform_indices = @transform_0, window_bounds = array<i64: 8, 1024>}, {transform_indices = @transform_1, window_bounds = array<i64: 8, 1024>}, {transform_indices = @transform_2, window_bounds = array<i64: 1024, 16>}, {pipeline_mode = #tpu.pipeline_mode<synchronous>, transform_indices = @transform_3, window_bounds = array<i64: 16, 64>}, {pipeline_mode = #tpu.pipeline_mode<synchronous>, transform_indices = @transform_4, window_bounds = array<i64: 1, 64>}, {pipeline_mode = #tpu.pipeline_mode<synchronous>, transform_indices = @transform_5, window_bounds = array<i64: 1, 64>}, {pipeline_mode = #tpu.pipeline_mode<synchronous>, transform_indices = @transform_6, window_bounds = array<i64: 64, 16>}, {pipeline_mode = #tpu.pipeline_mode<synchronous>, transform_indices = @transform_7, window_bounds = array<i64: 8, 16>}, {pipeline_mode = #tpu.pipeline_mode<synchronous>, transform_indices = @transform_8, window_bounds = array<i64: 8, 16>}, {pipeline_mode = #tpu.pipeline_mode<synchronous>, transform_indices = @transform_9, window_bounds = array<i64: 8, 16>}, {pipeline_mode = #tpu.pipeline_mode<synchronous>, transform_indices = @transform_10, window_bounds = array<i64: 8, 16>}]} {
    %c0_i32 = arith.constant 0 : i32
    %0 = arith.cmpi eq, %arg0, %c0_i32 : i32
    %1 = arith.extui %0 : i1 to i32
    %c0_i32_0 = arith.constant 0 : i32
    %2 = arith.cmpi ne, %1, %c0_i32_0 : i32
    scf.if %2 {
      %cst_17 = arith.constant 0.000000e+00 : f32
      %19 = vector.broadcast %cst_17 : f32 to vector<8x16xf32>
      %c0_18 = arith.constant 0 : index
      %c0_19 = arith.constant 0 : index
      %20 = vector.load %arg8[%c0_18, %c0_19] : memref<8x16xf32, #tpu.memory_space<vmem>>, vector<8x16xf32>
      tpu.vector_store %arg8[%c0_18, %c0_19], %19 {strides = array<i32>} : memref<8x16xf32, #tpu.memory_space<vmem>>, vector<8x16xf32>,
      %cst_20 = arith.constant 0.000000e+00 : f32
      %21 = vector.broadcast %cst_20 : f32 to vector<8x16xf32>
      %c0_21 = arith.constant 0 : index
      %c0_22 = arith.constant 0 : index
      %22 = vector.load %arg9[%c0_21, %c0_22] : memref<8x16xf32, #tpu.memory_space<vmem>>, vector<8x16xf32>
      tpu.vector_store %arg9[%c0_21, %c0_22], %21 {strides = array<i32>} : memref<8x16xf32, #tpu.memory_space<vmem>>, vector<8x16xf32>,
    } else {
    }
    %c0 = arith.constant 0 : index
    %c0_1 = arith.constant 0 : index
    %3 = vector.load %arg3[%c0, %c0_1] : memref<1024x16xbf16, #tpu.memory_space<vmem>>, vector<1024x16xbf16>
    %c0_2 = arith.constant 0 : index
    %c0_3 = arith.constant 0 : index
    %4 = vector.load %arg8[%c0_2, %c0_3] : memref<8x16xf32, #tpu.memory_space<vmem>>, vector<8x16xf32>
    %c0_4 = arith.constant 0 : index
    %c0_5 = arith.constant 0 : index
    %5 = vector.load %arg1[%c0_4, %c0_5] : memref<8x1024xf32, #tpu.memory_space<vmem>>, vector<8x1024xf32>
    %6 = arith.truncf %5 : vector<8x1024xf32> to vector<8x1024xbf16>
    %cst = arith.constant dense<0.000000e+00> : vector<8x16xf32>
    %7 = tpu.matmul %6, %3, %cst {dimension_numbers = #tpu.dot_dimension_numbers<[1], [0], [0], [1], [0, 0, 1, 1], [], []>} : vector<8x1024xbf16>, vector<1024x16xbf16>, vector<8x16xf32> -> vector<8x16xf32>
    %8 = arith.addf %4, %7 : vector<8x16xf32>
    %c0_6 = arith.constant 0 : index
    %c0_7 = arith.constant 0 : index
    %9 = vector.load %arg8[%c0_6, %c0_7] : memref<8x16xf32, #tpu.memory_space<vmem>>, vector<8x16xf32>
    tpu.vector_store %arg8[%c0_6, %c0_7], %8 {strides = array<i32>} : memref<8x16xf32, #tpu.memory_space<vmem>>, vector<8x16xf32>,
    %c0_8 = arith.constant 0 : index
    %c0_9 = arith.constant 0 : index
    %10 = vector.load %arg9[%c0_8, %c0_9] : memref<8x16xf32, #tpu.memory_space<vmem>>, vector<8x16xf32>
    %c0_10 = arith.constant 0 : index
    %c0_11 = arith.constant 0 : index
    %11 = vector.load %arg2[%c0_10, %c0_11] : memref<8x1024xf32, #tpu.memory_space<vmem>>, vector<8x1024xf32>
    %12 = arith.truncf %11 : vector<8x1024xf32> to vector<8x1024xbf16>
    %cst_12 = arith.constant dense<0.000000e+00> : vector<8x16xf32>
    %13 = tpu.matmul %12, %3, %cst_12 {dimension_numbers = #tpu.dot_dimension_numbers<[1], [0], [0], [1], [0, 0, 1, 1], [], []>} : vector<8x1024xbf16>, vector<1024x16xbf16>, vector<8x16xf32> -> vector<8x16xf32>
    %14 = arith.addf %10, %13 : vector<8x16xf32>
    %c0_13 = arith.constant 0 : index
    %c0_14 = arith.constant 0 : index
    %15 = vector.load %arg9[%c0_13, %c0_14] : memref<8x16xf32, #tpu.memory_space<vmem>>, vector<8x16xf32>
    tpu.vector_store %arg9[%c0_13, %c0_14], %14 {strides = array<i32>} : memref<8x16xf32, #tpu.memory_space<vmem>>, vector<8x16xf32>,
    %c0_i32_15 = arith.constant 0 : i32
    %16 = arith.cmpi eq, %arg0, %c0_i32_15 : i32
    %17 = arith.extui %16 : i1 to i32
    %c0_i32_16 = arith.constant 0 : i32
    %18 = arith.cmpi ne, %17, %c0_i32_16 : i32
    scf.if %18 {
      %c0_17 = arith.constant 0 : index
      %c0_18 = arith.constant 0 : index
      %19 = vector.load %arg4[%c0_17, %c0_18] : memref<16x64xbf16, #tpu.memory_space<vmem>>, vector<16x64xbf16>
      %c0_19 = arith.constant 0 : index
      %c0_20 = arith.constant 0 : index
      %20 = vector.load %arg7[%c0_19, %c0_20] : memref<64x16xbf16, #tpu.memory_space<vmem>>, vector<64x16xbf16>
      %c0_21 = arith.constant 0 : index
      %c0_22 = arith.constant 0 : index
      %21 = vector.load %arg5[%c0_21, %c0_22] : memref<1x64xf32, #tpu.memory_space<vmem>>, vector<1x64xf32>
      %c0_23 = arith.constant 0 : index
      %c0_24 = arith.constant 0 : index
      %22 = vector.load %arg6[%c0_23, %c0_24] : memref<1x64xf32, #tpu.memory_space<vmem>>, vector<1x64xf32>
      %c0_25 = arith.constant 0 : index
      %c0_26 = arith.constant 0 : index
      %23 = vector.load %arg8[%c0_25, %c0_26] : memref<8x16xf32, #tpu.memory_space<vmem>>, vector<8x16xf32>
      %24 = arith.truncf %23 : vector<8x16xf32> to vector<8x16xbf16>
      %cst_27 = arith.constant dense<0.000000e+00> : vector<8x64xf32>
      %25 = tpu.matmul %24, %19, %cst_27 {dimension_numbers = #tpu.dot_dimension_numbers<[1], [0], [0], [1], [0, 0, 1, 1], [], []>} : vector<8x16xbf16>, vector<16x64xbf16>, vector<8x64xf32> -> vector<8x64xf32>
      %cst_28 = arith.constant dense<0.000000e+00> : vector<64xf32>
      %26 = vector.multi_reduction <add>, %25, %cst_28 [0] : vector<8x64xf32> to vector<64xf32>
      %27 = vector.shape_cast %26 : vector<64xf32> to vector<1x64xf32>
      %cst_29 = arith.constant 8.000000e+00 : f32
      %28 = vector.broadcast %cst_29 : f32 to vector<1x64xf32>
      %29 = arith.divf %27, %28 : vector<1x64xf32>
      %30 = vector.broadcast %29 : vector<1x64xf32> to vector<8x64xf32>
      %31 = arith.subf %25, %30 : vector<8x64xf32>
      %32 = arith.mulf %31, %31 : vector<8x64xf32>
      %cst_30 = arith.constant dense<0.000000e+00> : vector<64xf32>
      %33 = vector.multi_reduction <add>, %32, %cst_30 [0] : vector<8x64xf32> to vector<64xf32>
      %34 = vector.shape_cast %33 : vector<64xf32> to vector<1x64xf32>
      %cst_31 = arith.constant 8.000000e+00 : f32
      %35 = vector.broadcast %cst_31 : f32 to vector<1x64xf32>
      %36 = arith.divf %34, %35 : vector<1x64xf32>
      %cst_32 = arith.constant 9.99999974E-6 : f32
      %37 = vector.broadcast %cst_32 : f32 to vector<1x64xf32>
      %38 = arith.addf %36, %37 : vector<1x64xf32>
      %39 = math.rsqrt %38 : vector<1x64xf32>
      %40 = arith.mulf %21, %39 : vector<1x64xf32>
      %41 = vector.broadcast %40 : vector<1x64xf32> to vector<8x64xf32>
      %42 = arith.mulf %31, %41 : vector<8x64xf32>
      %43 = vector.broadcast %22 : vector<1x64xf32> to vector<8x64xf32>
      %44 = arith.addf %42, %43 : vector<8x64xf32>
      %cst_33 = arith.constant 0.000000e+00 : f32
      %45 = vector.broadcast %cst_33 : f32 to vector<8x64xf32>
      %46 = arith.maximumf %44, %45 : vector<8x64xf32>
      %47 = arith.truncf %46 : vector<8x64xf32> to vector<8x64xbf16>
      %cst_34 = arith.constant dense<0.000000e+00> : vector<8x16xf32>
      %48 = tpu.matmul %47, %20, %cst_34 {dimension_numbers = #tpu.dot_dimension_numbers<[1], [0], [0], [1], [0, 0, 1, 1], [], []>} : vector<8x64xbf16>, vector<64x16xbf16>, vector<8x16xf32> -> vector<8x16xf32>
      %c0_35 = arith.constant 0 : index
      %c0_36 = arith.constant 0 : index
      %49 = vector.load %arg10[%c0_35, %c0_36] : memref<8x16xf32, #tpu.memory_space<vmem>>, vector<8x16xf32>
      tpu.vector_store %arg10[%c0_35, %c0_36], %48 {strides = array<i32>} : memref<8x16xf32, #tpu.memory_space<vmem>>, vector<8x16xf32>,
      %c0_37 = arith.constant 0 : index
      %c0_38 = arith.constant 0 : index
      %50 = vector.load %arg9[%c0_37, %c0_38] : memref<8x16xf32, #tpu.memory_space<vmem>>, vector<8x16xf32>
      %51 = arith.truncf %50 : vector<8x16xf32> to vector<8x16xbf16>
      %cst_39 = arith.constant dense<0.000000e+00> : vector<8x64xf32>
      %52 = tpu.matmul %51, %19, %cst_39 {dimension_numbers = #tpu.dot_dimension_numbers<[1], [0], [0], [1], [0, 0, 1, 1], [], []>} : vector<8x16xbf16>, vector<16x64xbf16>, vector<8x64xf32> -> vector<8x64xf32>
      %cst_40 = arith.constant dense<0.000000e+00> : vector<64xf32>
      %53 = vector.multi_reduction <add>, %52, %cst_40 [0] : vector<8x64xf32> to vector<64xf32>
      %54 = vector.shape_cast %53 : vector<64xf32> to vector<1x64xf32>
      %cst_41 = arith.constant 8.000000e+00 : f32
      %55 = vector.broadcast %cst_41 : f32 to vector<1x64xf32>
      %56 = arith.divf %54, %55 : vector<1x64xf32>
      %57 = vector.broadcast %56 : vector<1x64xf32> to vector<8x64xf32>
      %58 = arith.subf %52, %57 : vector<8x64xf32>
      %59 = arith.mulf %58, %58 : vector<8x64xf32>
      %cst_42 = arith.constant dense<0.000000e+00> : vector<64xf32>
      %60 = vector.multi_reduction <add>, %59, %cst_42 [0] : vector<8x64xf32> to vector<64xf32>
      %61 = vector.shape_cast %60 : vector<64xf32> to vector<1x64xf32>
      %cst_43 = arith.constant 8.000000e+00 : f32
      %62 = vector.broadcast %cst_43 : f32 to vector<1x64xf32>
      %63 = arith.divf %61, %62 : vector<1x64xf32>
      %cst_44 = arith.constant 9.99999974E-6 : f32
      %64 = vector.broadcast %cst_44 : f32 to vector<1x64xf32>
      %65 = arith.addf %63, %64 : vector<1x64xf32>
      %66 = math.rsqrt %65 : vector<1x64xf32>
      %67 = arith.mulf %21, %66 : vector<1x64xf32>
      %68 = vector.broadcast %67 : vector<1x64xf32> to vector<8x64xf32>
      %69 = arith.mulf %58, %68 : vector<8x64xf32>
      %70 = vector.broadcast %22 : vector<1x64xf32> to vector<8x64xf32>
      %71 = arith.addf %69, %70 : vector<8x64xf32>
      %cst_45 = arith.constant 0.000000e+00 : f32
      %72 = vector.broadcast %cst_45 : f32 to vector<8x64xf32>
      %73 = arith.maximumf %71, %72 : vector<8x64xf32>
      %74 = arith.truncf %73 : vector<8x64xf32> to vector<8x64xbf16>
      %cst_46 = arith.constant dense<0.000000e+00> : vector<8x16xf32>
      %75 = tpu.matmul %74, %20, %cst_46 {dimension_numbers = #tpu.dot_dimension_numbers<[1], [0], [0], [1], [0, 0, 1, 1], [], []>} : vector<8x64xbf16>, vector<64x16xbf16>, vector<8x16xf32> -> vector<8x16xf32>
      %c0_47 = arith.constant 0 : index
      %c0_48 = arith.constant 0 : index
      %76 = vector.load %arg11[%c0_47, %c0_48] : memref<8x16xf32, #tpu.memory_space<vmem>>, vector<8x16xf32>
      tpu.vector_store %arg11[%c0_47, %c0_48], %75 {strides = array<i32>} : memref<8x16xf32, #tpu.memory_space<vmem>>, vector<8x16xf32>,
    } else {
    }
    return
  }
  func.func @transform_0(%arg0: i32) -> (i32, i32) {
    %c0_i32 = arith.constant 0 : i32
    %c0_i32_0 = arith.constant 0 : i32
    return %c0_i32, %arg0 : i32, i32
  }
  func.func @transform_1(%arg0: i32) -> (i32, i32) {
    %c0_i32 = arith.constant 0 : i32
    %c0_i32_0 = arith.constant 0 : i32
    return %c0_i32, %arg0 : i32, i32
  }
  func.func @transform_2(%arg0: i32) -> (i32, i32) {
    %c0_i32 = arith.constant 0 : i32
    %c0_i32_0 = arith.constant 0 : i32
    return %arg0, %c0_i32 : i32, i32
  }
  func.func @transform_3(%arg0: i32) -> (i32, i32) {
    %c0_i32 = arith.constant 0 : i32
    %c0_i32_0 = arith.constant 0 : i32
    %c0_i32_1 = arith.constant 0 : i32
    return %c0_i32, %c0_i32_0 : i32, i32
  }
  func.func @transform_4(%arg0: i32) -> (i32, i32) {
    %c0_i32 = arith.constant 0 : i32
    %c0_i32_0 = arith.constant 0 : i32
    %c0_i32_1 = arith.constant 0 : i32
    return %c0_i32, %c0_i32_0 : i32, i32
  }
  func.func @transform_5(%arg0: i32) -> (i32, i32) {
    %c0_i32 = arith.constant 0 : i32
    %c0_i32_0 = arith.constant 0 : i32
    %c0_i32_1 = arith.constant 0 : i32
    return %c0_i32, %c0_i32_0 : i32, i32
  }
  func.func @transform_6(%arg0: i32) -> (i32, i32) {
    %c0_i32 = arith.constant 0 : i32
    %c0_i32_0 = arith.constant 0 : i32
    %c0_i32_1 = arith.constant 0 : i32
    return %c0_i32, %c0_i32_0 : i32, i32
  }
  func.func @transform_7(%arg0: i32) -> (i32, i32) {
    %c0_i32 = arith.constant 0 : i32
    %c0_i32_0 = arith.constant 0 : i32
    %c0_i32_1 = arith.constant 0 : i32
    return %c0_i32, %c0_i32_0 : i32, i32
  }
  func.func @transform_8(%arg0: i32) -> (i32, i32) {
    %c0_i32 = arith.constant 0 : i32
    %c0_i32_0 = arith.constant 0 : i32
    %c0_i32_1 = arith.constant 0 : i32
    return %c0_i32, %c0_i32_0 : i32, i32
  }
  func.func @transform_9(%arg0: i32) -> (i32, i32) {
    %c0_i32 = arith.constant 0 : i32
    %c0_i32_0 = arith.constant 0 : i32
    %c0_i32_1 = arith.constant 0 : i32
    return %c0_i32, %c0_i32_0 : i32, i32
  }
  func.func @transform_10(%arg0: i32) -> (i32, i32) {
    %c0_i32 = arith.constant 0 : i32
    %c0_i32_0 = arith.constant 0 : i32
    %c0_i32_1 = arith.constant 0 : i32
    return %c0_i32, %c0_i32_0 : i32, i32
  }
}

</mosaic_0001>

<llo_original>
// kernel: siam_ul_forward.1
$region0: #{siam_ul_forward.1}
  #allocation0 [shape = 'u32[]', space=smem, size = 0x4, offset = 0x4, fixed_abs, tag = 'smem constant byte address 0x4 - core index']
  #allocation1 [shape = 'u32[72,128]{1,0:T(1,128)}', space=vmem, size = 0x9000, scoped, tag = 'internal scratch']
  %s0 = inlined_call_operand.vmem [shape: f32[8,1024], index: 0, kind: input, shape index: {}]
  %s1 = inlined_call_operand.vmem [shape: f32[8,1024], index: 1, kind: input, shape index: {}]
  %s2 = inlined_call_operand.vmem [shape: bf16[1024,16], index: 2, kind: input, shape index: {}]
  %s3 = inlined_call_operand.vmem [shape: bf16[16,64], index: 3, kind: input, shape index: {}]
  %s4 = inlined_call_operand.vmem [shape: f32[1,64], index: 4, kind: input, shape index: {}]
  %s5 = inlined_call_operand.vmem [shape: f32[1,64], index: 5, kind: input, shape index: {}]
  %s6 = inlined_call_operand.vmem [shape: bf16[64,16], index: 6, kind: input, shape index: {}]
  %s7 = inlined_call_operand.vmem [shape: f32[8,16], index: 7, kind: output, shape index: {0}]
  %s8 = inlined_call_operand.vmem [shape: f32[8,16], index: 8, kind: output, shape index: {1}]
  %s9 = inlined_call_operand.hbm [shape: f32[8,16], index: 9, kind: output, shape index: {2}]
  %s10 = inlined_call_operand.hbm [shape: f32[8,16], index: 10, kind: output, shape index: {3}]
  %11 = xla_tuple %s7, %s8, %s9, %s10
  %s12 = sld [smem:[#allocation0]]
  $region70: #{siam_ul_forward.1} parent=0
    _
  %s14 = ssub.s32 1, %s12
  %s15 = scalar_select 0, %s14, %s12
  $region1: #{siam_ul_forward.1} parent=0
    #allocation2 [shape = 'u8[4096]{0}', space=vmem, size = 0x1000, scoped, tag = 'output window, operand 2, single buffered']
    #allocation3 [shape = 's32[1]{0}', space=sflag, size = 0x4, scoped, tag = 'scoped memory for siam_ul_forward.1']
    #allocation4 [shape = 'u8[4096]{0}', space=vmem, size = 0x1000, scoped, tag = 'output window, operand 3, single buffered']
    #allocation5 [shape = 's32[1]{0}', space=sflag, size = 0x4, scoped, tag = 'scoped memory for siam_ul_forward.1']
    %16 = vsyncpa [#allocation3], 0
    %17 = vsyncpa [#allocation5], 0
    // Predicated region
    $region2: #{siam_ul_forward.1} parent=1 // pred_check
      _
    $region3: #{siam_ul_forward.1} parent=1 // pred_check_branch
      %19 = sbr.rel (0) target = $region5
    $region4: #{siam_ul_forward.1} parent=1 // pred_region
      _
    $region5: #{siam_ul_forward.1} parent=1 // pred_fallthru
      _
    // Predicated region
    $region6: #{siam_ul_forward.1} parent=1 // pred_check
      _
    $region7: #{siam_ul_forward.1} parent=1 // pred_check_branch
      %21 = sbr.rel (0) target = $region9
    $region8: #{siam_ul_forward.1} parent=1 // pred_region
      _
    $region9: #{siam_ul_forward.1} parent=1 // pred_fallthru
      _
    // Predicated region
    $region10: #{siam_ul_forward.1} parent=1 // pred_check
      _
    $region11: #{siam_ul_forward.1} parent=1 // pred_check_branch
      %23 = sbr.rel (0) target = $region13
    $region12: #{siam_ul_forward.1} parent=1 // pred_region
      _
    $region13: #{siam_ul_forward.1} parent=1 // pred_fallthru
      _
    // Predicated region
    $region14: #{siam_ul_forward.1} parent=1 // pred_check
      _
    $region15: #{siam_ul_forward.1} parent=1 // pred_check_branch
      %25 = sbr.rel (0) target = $region17
    $region16: #{siam_ul_forward.1} parent=1 // pred_region
      _
    $region17: #{siam_ul_forward.1} parent=1 // pred_fallthru
      _
    // Predicated region
    $region18: #{siam_ul_forward.1} parent=1 // pred_check
      _
    $region19: #{siam_ul_forward.1} parent=1 // pred_check_branch
      %27 = sbr.rel (0) target = $region21
    $region20: #{siam_ul_forward.1} parent=1 // pred_region
      _
    $region21: #{siam_ul_forward.1} parent=1 // pred_fallthru
      _
    // Predicated region
    $region22: #{siam_ul_forward.1} parent=1 // pred_check
      _
    $region23: #{siam_ul_forward.1} parent=1 // pred_check_branch
      %29 = sbr.rel (0) target = $region25
    $region24: #{siam_ul_forward.1} parent=1 // pred_region
      _
    $region25: #{siam_ul_forward.1} parent=1 // pred_fallthru
      _
    // Predicated region
    $region26: #{siam_ul_forward.1} parent=1 // pred_check
      _
    $region27: #{siam_ul_forward.1} parent=1 // pred_check_branch
      %31 = sbr.rel (0) target = $region29
    $region28: #{siam_ul_forward.1} parent=1 // pred_region
      _
    $region29: #{siam_ul_forward.1} parent=1 // pred_fallthru
      _
    %p33 = scmp.eq.s32.totalorder 0, 0
    // Predicated region
    $region30: #{siam_ul_forward.1} parent=1 // pred_check
      %p34 = pneg %p33
    $region31: #{siam_ul_forward.1} parent=1 // pred_check_branch
      %36 = sbr.rel (%p34) target = $region33
    $region32: #{siam_ul_forward.1} parent=1 // pred_region
      %vm37 = vcmask 130048
      %38 = vst.msk [vmem:[%s7] sm:$0xff] %vm37, 0.0
      %39 = vst.msk [vmem:[%s8] sm:$0xff] %vm37, 0.0
    $region33: #{siam_ul_forward.1} parent=1 // pred_fallthru
      _
    %v40 = vld [vmem:[%s2] sm:$0xf]
    %v41 = vld [vmem:[%s2 + $0x4] sm:$0xf]
    %v42 = vld [vmem:[%s2 + $0x8] sm:$0xf]
    %v43 = vld [vmem:[%s2 + $0xc] sm:$0xf]
    %v44 = vld [vmem:[%s2 + $0x10] sm:$0xf]
    %v45 = vld [vmem:[%s2 + $0x14] sm:$0xf]
    %v46 = vld [vmem:[%s2 + $0x18] sm:$0xf]
    %v47 = vld [vmem:[%s2 + $0x1c] sm:$0xf]
    %v48 = vld [vmem:[%s2 + $0x20] sm:$0xf]
    %v49 = vld [vmem:[%s2 + $0x24] sm:$0xf]
    %v50 = vld [vmem:[%s2 + $0x28] sm:$0xf]
    %v51 = vld [vmem:[%s2 + $0x2c] sm:$0xf]
    %v52 = vld [vmem:[%s2 + $0x30] sm:$0xf]
    %v53 = vld [vmem:[%s2 + $0x34] sm:$0xf]
    %v54 = vld [vmem:[%s2 + $0x38] sm:$0xf]
    %v55 = vld [vmem:[%s2 + $0x3c] sm:$0xf]
    %v56 = vld [vmem:[%s2 + $0x40] sm:$0xf]
    %v57 = vld [vmem:[%s2 + $0x44] sm:$0xf]
    %v58 = vld [vmem:[%s2 + $0x48] sm:$0xf]
    %v59 = vld [vmem:[%s2 + $0x4c] sm:$0xf]
    %v60 = vld [vmem:[%s2 + $0x50] sm:$0xf]
    %v61 = vld [vmem:[%s2 + $0x54] sm:$0xf]
    %v62 = vld [vmem:[%s2 + $0x58] sm:$0xf]
    %v63 = vld [vmem:[%s2 + $0x5c] sm:$0xf]
    %v64 = vld [vmem:[%s2 + $0x60] sm:$0xf]
    %v65 = vld [vmem:[%s2 + $0x64] sm:$0xf]
    %v66 = vld [vmem:[%s2 + $0x68] sm:$0xf]
    %v67 = vld [vmem:[%s2 + $0x6c] sm:$0xf]
    %v68 = vld [vmem:[%s2 + $0x70] sm:$0xf]
    %v69 = vld [vmem:[%s2 + $0x74] sm:$0xf]
    %v70 = vld [vmem:[%s2 + $0x78] sm:$0xf]
    %v71 = vld [vmem:[%s2 + $0x7c] sm:$0xf]
    %v72 = vld [vmem:[%s2 + $0x80] sm:$0xf]
    %v73 = vld [vmem:[%s2 + $0x84] sm:$0xf]
    %v74 = vld [vmem:[%s2 + $0x88] sm:$0xf]
    %v75 = vld [vmem:[%s2 + $0x8c] sm:$0xf]
    %v76 = vld [vmem:[%s2 + $0x90] sm:$0xf]
    %v77 = vld [vmem:[%s2 + $0x94] sm:$0xf]
    %v78 = vld [vmem:[%s2 + $0x98] sm:$0xf]
    %v79 = vld [vmem:[%s2 + $0x9c] sm:$0xf]
    %v80 = vld [vmem:[%s2 + $0xa0] sm:$0xf]
    %v81 = vld [vmem:[%s2 + $0xa4] sm:$0xf]
    %v82 = vld [vmem:[%s2 + $0xa8] sm:$0xf]
    %v83 = vld [vmem:[%s2 + $0xac] sm:$0xf]
    %v84 = vld [vmem:[%s2 + $0xb0] sm:$0xf]
    %v85 = vld [vmem:[%s2 + $0xb4] sm:$0xf]
    %v86 = vld [vmem:[%s2 + $0xb8] sm:$0xf]
    %v87 = vld [vmem:[%s2 + $0xbc] sm:$0xf]
    %v88 = vld [vmem:[%s2 + $0xc0] sm:$0xf]
    %v89 = vld [vmem:[%s2 + $0xc4] sm:$0xf]
    %v90 = vld [vmem:[%s2 + $0xc8] sm:$0xf]
    %v91 = vld [vmem:[%s2 + $0xcc] sm:$0xf]
    %v92 = vld [vmem:[%s2 + $0xd0] sm:$0xf]
    %v93 = vld [vmem:[%s2 + $0xd4] sm:$0xf]
    %v94 = vld [vmem:[%s2 + $0xd8] sm:$0xf]
    %v95 = vld [vmem:[%s2 + $0xdc] sm:$0xf]
    %v96 = vld [vmem:[%s2 + $0xe0] sm:$0xf]
    %v97 = vld [vmem:[%s2 + $0xe4] sm:$0xf]
    %v98 = vld [vmem:[%s2 + $0xe8] sm:$0xf]
    %v99 = vld [vmem:[%s2 + $0xec] sm:$0xf]
    %v100 = vld [vmem:[%s2 + $0xf0] sm:$0xf]
    %v101 = vld [vmem:[%s2 + $0xf4] sm:$0xf]
    %v102 = vld [vmem:[%s2 + $0xf8] sm:$0xf]
    %v103 = vld [vmem:[%s2 + $0xfc] sm:$0xf]
    %v104 = vld [vmem:[%s2 + $0x100] sm:$0xf]
    %v105 = vld [vmem:[%s2 + $0x104] sm:$0xf]
    %v106 = vld [vmem:[%s2 + $0x108] sm:$0xf]
    %v107 = vld [vmem:[%s2 + $0x10c] sm:$0xf]
    %v108 = vld [vmem:[%s2 + $0x110] sm:$0xf]
    %v109 = vld [vmem:[%s2 + $0x114] sm:$0xf]
    %v110 = vld [vmem:[%s2 + $0x118] sm:$0xf]
    %v111 = vld [vmem:[%s2 + $0x11c] sm:$0xf]
    %v112 = vld [vmem:[%s2 + $0x120] sm:$0xf]
    %v113 = vld [vmem:[%s2 + $0x124] sm:$0xf]
    %v114 = vld [vmem:[%s2 + $0x128] sm:$0xf]
    %v115 = vld [vmem:[%s2 + $0x12c] sm:$0xf]
    %v116 = vld [vmem:[%s2 + $0x130] sm:$0xf]
    %v117 = vld [vmem:[%s2 + $0x134] sm:$0xf]
    %v118 = vld [vmem:[%s2 + $0x138] sm:$0xf]
    %v119 = vld [vmem:[%s2 + $0x13c] sm:$0xf]
    %v120 = vld [vmem:[%s2 + $0x140] sm:$0xf]
    %v121 = vld [vmem:[%s2 + $0x144] sm:$0xf]
    %v122 = vld [vmem:[%s2 + $0x148] sm:$0xf]
    %v123 = vld [vmem:[%s2 + $0x14c] sm:$0xf]
    %v124 = vld [vmem:[%s2 + $0x150] sm:$0xf]
    %v125 = vld [vmem:[%s2 + $0x154] sm:$0xf]
    %v126 = vld [vmem:[%s2 + $0x158] sm:$0xf]
    %v127 = vld [vmem:[%s2 + $0x15c] sm:$0xf]
    %v128 = vld [vmem:[%s2 + $0x160] sm:$0xf]
    %v129 = vld [vmem:[%s2 + $0x164] sm:$0xf]
    %v130 = vld [vmem:[%s2 + $0x168] sm:$0xf]
    %v131 = vld [vmem:[%s2 + $0x16c] sm:$0xf]
    %v132 = vld [vmem:[%s2 + $0x170] sm:$0xf]
    %v133 = vld [vmem:[%s2 + $0x174] sm:$0xf]
    %v134 = vld [vmem:[%s2 + $0x178] sm:$0xf]
    %v135 = vld [vmem:[%s2 + $0x17c] sm:$0xf]
    %v136 = vld [vmem:[%s2 + $0x180] sm:$0xf]
    %v137 = vld [vmem:[%s2 + $0x184] sm:$0xf]
    %v138 = vld [vmem:[%s2 + $0x188] sm:$0xf]
    %v139 = vld [vmem:[%s2 + $0x18c] sm:$0xf]
    %v140 = vld [vmem:[%s2 + $0x190] sm:$0xf]
    %v141 = vld [vmem:[%s2 + $0x194] sm:$0xf]
    %v142 = vld [vmem:[%s2 + $0x198] sm:$0xf]
    %v143 = vld [vmem:[%s2 + $0x19c] sm:$0xf]
    %v144 = vld [vmem:[%s2 + $0x1a0] sm:$0xf]
    %v145 = vld [vmem:[%s2 + $0x1a4] sm:$0xf]
    %v146 = vld [vmem:[%s2 + $0x1a8] sm:$0xf]
    %v147 = vld [vmem:[%s2 + $0x1ac] sm:$0xf]
    %v148 = vld [vmem:[%s2 + $0x1b0] sm:$0xf]
    %v149 = vld [vmem:[%s2 + $0x1b4] sm:$0xf]
    %v150 = vld [vmem:[%s2 + $0x1b8] sm:$0xf]
    %v151 = vld [vmem:[%s2 + $0x1bc] sm:$0xf]
    %v152 = vld [vmem:[%s2 + $0x1c0] sm:$0xf]
    %v153 = vld [vmem:[%s2 + $0x1c4] sm:$0xf]
    %v154 = vld [vmem:[%s2 + $0x1c8] sm:$0xf]
    %v155 = vld [vmem:[%s2 + $0x1cc] sm:$0xf]
    %v156 = vld [vmem:[%s2 + $0x1d0] sm:$0xf]
    %v157 = vld [vmem:[%s2 + $0x1d4] sm:$0xf]
    %v158 = vld [vmem:[%s2 + $0x1d8] sm:$0xf]
    %v159 = vld [vmem:[%s2 + $0x1dc] sm:$0xf]
    %v160 = vld [vmem:[%s2 + $0x1e0] sm:$0xf]
    %v161 = vld [vmem:[%s2 + $0x1e4] sm:$0xf]
    %v162 = vld [vmem:[%s2 + $0x1e8] sm:$0xf]
    %v163 = vld [vmem:[%s2 + $0x1ec] sm:$0xf]
    %v164 = vld [vmem:[%s2 + $0x1f0] sm:$0xf]
    %v165 = vld [vmem:[%s2 + $0x1f4] sm:$0xf]
    %v166 = vld [vmem:[%s2 + $0x1f8] sm:$0xf]
    %v167 = vld [vmem:[%s2 + $0x1fc] sm:$0xf]
    %v168 = vld [vmem:[%s7] sm:$0xff]
    %v169 = vld [vmem:[%s0] sm:$0xff]
    %v170 = vld [vmem:[%s0 + $0x8] sm:$0xff]
    %v171 = vld [vmem:[%s0 + $0x10] sm:$0xff]
    %v172 = vld [vmem:[%s0 + $0x18] sm:$0xff]
    %v173 = vld [vmem:[%s0 + $0x20] sm:$0xff]
    %v174 = vld [vmem:[%s0 + $0x28] sm:$0xff]
    %v175 = vld [vmem:[%s0 + $0x30] sm:$0xff]
    %v176 = vld [vmem:[%s0 + $0x38] sm:$0xff]
    %v177 = vpack.c.bf16 %v169, %v169
    %v178 = vpack.c.bf16 %v170, %v170
    %v179 = vpack.c.bf16 %v171, %v171
    %v180 = vpack.c.bf16 %v172, %v172
    %v181 = vpack.c.bf16 %v173, %v173
    %v182 = vpack.c.bf16 %v174, %v174
    %v183 = vpack.c.bf16 %v175, %v175
    %v184 = vpack.c.bf16 %v176, %v176
    %v313 = vunpack.c.l.b16 %v40
    %v314 = vunpack.c.l.b16 %v41
    %v315 = vunpack.c.l.b16 %v42
    %v316 = vunpack.c.l.b16 %v43
    %v317 = vunpack.c.l.b16 %v44
    %v318 = vunpack.c.l.b16 %v45
    %v319 = vunpack.c.l.b16 %v46
    %v320 = vunpack.c.l.b16 %v47
    %v321 = vunpack.c.l.b16 %v48
    %v322 = vunpack.c.l.b16 %v49
    %v323 = vunpack.c.l.b16 %v50
    %v324 = vunpack.c.l.b16 %v51
    %v325 = vunpack.c.l.b16 %v52
    %v326 = vunpack.c.l.b16 %v53
    %v327 = vunpack.c.l.b16 %v54
    %v328 = vunpack.c.l.b16 %v55
    %v329 = vunpack.c.l.b16 %v56
    %v330 = vunpack.c.l.b16 %v57
    %v331 = vunpack.c.l.b16 %v58
    %v332 = vunpack.c.l.b16 %v59
    %v333 = vunpack.c.l.b16 %v60
    %v334 = vunpack.c.l.b16 %v61
    %v335 = vunpack.c.l.b16 %v62
    %v336 = vunpack.c.l.b16 %v63
    %v337 = vunpack.c.l.b16 %v64
    %v338 = vunpack.c.l.b16 %v65
    %v339 = vunpack.c.l.b16 %v66
    %v340 = vunpack.c.l.b16 %v67
    %v341 = vunpack.c.l.b16 %v68
    %v342 = vunpack.c.l.b16 %v69
    %v343 = vunpack.c.l.b16 %v70
    %v344 = vunpack.c.l.b16 %v71
    %v345 = vunpack.c.l.b16 %v72
    %v346 = vunpack.c.l.b16 %v73
    %v347 = vunpack.c.l.b16 %v74
    %v348 = vunpack.c.l.b16 %v75
    %v349 = vunpack.c.l.b16 %v76
    %v350 = vunpack.c.l.b16 %v77
    %v351 = vunpack.c.l.b16 %v78
    %v352 = vunpack.c.l.b16 %v79
    %v353 = vunpack.c.l.b16 %v80
    %v354 = vunpack.c.l.b16 %v81
    %v355 = vunpack.c.l.b16 %v82
    %v356 = vunpack.c.l.b16 %v83
    %v357 = vunpack.c.l.b16 %v84
    %v358 = vunpack.c.l.b16 %v85
    %v359 = vunpack.c.l.b16 %v86
    %v360 = vunpack.c.l.b16 %v87
    %v361 = vunpack.c.l.b16 %v88
    %v362 = vunpack.c.l.b16 %v89
    %v363 = vunpack.c.l.b16 %v90
    %v364 = vunpack.c.l.b16 %v91
    %v365 = vunpack.c.l.b16 %v92
    %v366 = vunpack.c.l.b16 %v93
    %v367 = vunpack.c.l.b16 %v94
    %v368 = vunpack.c.l.b16 %v95
    %v369 = vunpack.c.l.b16 %v96
    %v370 = vunpack.c.l.b16 %v97
    %v371 = vunpack.c.l.b16 %v98
    %v372 = vunpack.c.l.b16 %v99
    %v373 = vunpack.c.l.b16 %v100
    %v374 = vunpack.c.l.b16 %v101
    %v375 = vunpack.c.l.b16 %v102
    %v376 = vunpack.c.l.b16 %v103
    %v377 = vunpack.c.l.b16 %v104
    %v378 = vunpack.c.l.b16 %v105
    %v379 = vunpack.c.l.b16 %v106
    %v380 = vunpack.c.l.b16 %v107
    %v381 = vunpack.c.l.b16 %v108
    %v382 = vunpack.c.l.b16 %v109
    %v383 = vunpack.c.l.b16 %v110
    %v384 = vunpack.c.l.b16 %v111
    %v385 = vunpack.c.l.b16 %v112
    %v386 = vunpack.c.l.b16 %v113
    %v387 = vunpack.c.l.b16 %v114
    %v388 = vunpack.c.l.b16 %v115
    %v389 = vunpack.c.l.b16 %v116
    %v390 = vunpack.c.l.b16 %v117
    %v391 = vunpack.c.l.b16 %v118
    %v392 = vunpack.c.l.b16 %v119
    %v393 = vunpack.c.l.b16 %v120
    %v394 = vunpack.c.l.b16 %v121
    %v395 = vunpack.c.l.b16 %v122
    %v396 = vunpack.c.l.b16 %v123
    %v397 = vunpack.c.l.b16 %v124
    %v398 = vunpack.c.l.b16 %v125
    %v399 = vunpack.c.l.b16 %v126
    %v400 = vunpack.c.l.b16 %v127
    %v401 = vunpack.c.l.b16 %v128
    %v402 = vunpack.c.l.b16 %v129
    %v403 = vunpack.c.l.b16 %v130
    %v404 = vunpack.c.l.b16 %v131
    %v405 = vunpack.c.l.b16 %v132
    %v406 = vunpack.c.l.b16 %v133
    %v407 = vunpack.c.l.b16 %v134
    %v408 = vunpack.c.l.b16 %v135
    %v409 = vunpack.c.l.b16 %v136
    %v410 = vunpack.c.l.b16 %v137
    %v411 = vunpack.c.l.b16 %v138
    %v412 = vunpack.c.l.b16 %v139
    %v413 = vunpack.c.l.b16 %v140
    %v414 = vunpack.c.l.b16 %v141
    %v415 = vunpack.c.l.b16 %v142
    %v416 = vunpack.c.l.b16 %v143
    %v417 = vunpack.c.l.b16 %v144
    %v418 = vunpack.c.l.b16 %v145
    %v419 = vunpack.c.l.b16 %v146
    %v420 = vunpack.c.l.b16 %v147
    %v421 = vunpack.c.l.b16 %v148
    %v422 = vunpack.c.l.b16 %v149
    %v423 = vunpack.c.l.b16 %v150
    %v424 = vunpack.c.l.b16 %v151
    %v425 = vunpack.c.l.b16 %v152
    %v426 = vunpack.c.l.b16 %v153
    %v427 = vunpack.c.l.b16 %v154
    %v428 = vunpack.c.l.b16 %v155
    %v429 = vunpack.c.l.b16 %v156
    %v430 = vunpack.c.l.b16 %v157
    %v431 = vunpack.c.l.b16 %v158
    %v432 = vunpack.c.l.b16 %v159
    %v433 = vunpack.c.l.b16 %v160
    %v434 = vunpack.c.l.b16 %v161
    %v435 = vunpack.c.l.b16 %v162
    %v436 = vunpack.c.l.b16 %v163
    %v437 = vunpack.c.l.b16 %v164
    %v438 = vunpack.c.l.b16 %v165
    %v439 = vunpack.c.l.b16 %v166
    %v440 = vunpack.c.l.b16 %v167
    %v441 = vpack.c.b16 %v314, %v313
    %v442 = vpack.c.b16 %v316, %v315
    %v443 = vpack.c.b16 %v318, %v317
    %v444 = vpack.c.b16 %v320, %v319
    %v445 = vpack.c.b16 %v322, %v321
    %v446 = vpack.c.b16 %v324, %v323
    %v447 = vpack.c.b16 %v326, %v325
    %v448 = vpack.c.b16 %v328, %v327
    %v449 = vpack.c.b16 %v330, %v329
    %v450 = vpack.c.b16 %v332, %v331
    %v451 = vpack.c.b16 %v334, %v333
    %v452 = vpack.c.b16 %v336, %v335
    %v453 = vpack.c.b16 %v338, %v337
    %v454 = vpack.c.b16 %v340, %v339
    %v455 = vpack.c.b16 %v342, %v341
    %v456 = vpack.c.b16 %v344, %v343
    %v457 = vpack.c.b16 %v346, %v345
    %v458 = vpack.c.b16 %v348, %v347
    %v459 = vpack.c.b16 %v350, %v349
    %v460 = vpack.c.b16 %v352, %v351
    %v461 = vpack.c.b16 %v354, %v353
    %v462 = vpack.c.b16 %v356, %v355
    %v463 = vpack.c.b16 %v358, %v357
    %v464 = vpack.c.b16 %v360, %v359
    %v465 = vpack.c.b16 %v362, %v361
    %v466 = vpack.c.b16 %v364, %v363
    %v467 = vpack.c.b16 %v366, %v365
    %v468 = vpack.c.b16 %v368, %v367
    %v469 = vpack.c.b16 %v370, %v369
    %v470 = vpack.c.b16 %v372, %v371
    %v471 = vpack.c.b16 %v374, %v373
    %v472 = vpack.c.b16 %v376, %v375
    %v473 = vpack.c.b16 %v378, %v377
    %v474 = vpack.c.b16 %v380, %v379
    %v475 = vpack.c.b16 %v382, %v381
    %v476 = vpack.c.b16 %v384, %v383
    %v477 = vpack.c.b16 %v386, %v385
    %v478 = vpack.c.b16 %v388, %v387
    %v479 = vpack.c.b16 %v390, %v389
    %v480 = vpack.c.b16 %v392, %v391
    %v481 = vpack.c.b16 %v394, %v393
    %v482 = vpack.c.b16 %v396, %v395
    %v483 = vpack.c.b16 %v398, %v397
    %v484 = vpack.c.b16 %v400, %v399
    %v485 = vpack.c.b16 %v402, %v401
    %v486 = vpack.c.b16 %v404, %v403
    %v487 = vpack.c.b16 %v406, %v405
    %v488 = vpack.c.b16 %v408, %v407
    %v489 = vpack.c.b16 %v410, %v409
    %v490 = vpack.c.b16 %v412, %v411
    %v491 = vpack.c.b16 %v414, %v413
    %v492 = vpack.c.b16 %v416, %v415
    %v493 = vpack.c.b16 %v418, %v417
    %v494 = vpack.c.b16 %v420, %v419
    %v495 = vpack.c.b16 %v422, %v421
    %v496 = vpack.c.b16 %v424, %v423
    %v497 = vpack.c.b16 %v426, %v425
    %v498 = vpack.c.b16 %v428, %v427
    %v499 = vpack.c.b16 %v430, %v429
    %v500 = vpack.c.b16 %v432, %v431
    %v501 = vpack.c.b16 %v434, %v433
    %v502 = vpack.c.b16 %v436, %v435
    %v503 = vpack.c.b16 %v438, %v437
    %v504 = vpack.c.b16 %v440, %v439
    %569 = vmatpush.bf16.msra.mxu0 %v448
    %570 = vmatpush.bf16.msra.mxu0 %v447
    %571 = vmatpush.bf16.msra.mxu0 %v446
    %572 = vmatpush.bf16.msra.mxu0 %v445
    %573 = vmatpush.bf16.msra.mxu0 %v444
    %574 = vmatpush.bf16.msra.mxu0 %v443
    %575 = vmatpush.bf16.msra.mxu0 %v442
    %576 = vmatpush.bf16.msra.mxu0 %v441
    %577 = vmatmul.bf16.gmra.mxu0 %v177
    %v578 = vpop.f32.mrf.mxu0
    %v579 = vadd.f32 0.0, %v578
    %v580 = vpop.f32.mrf.mxu0
    %581 = vdwg.mxu0
    %582 = vmatpush.bf16.msra.mxu0 %v456
    %583 = vmatpush.bf16.msra.mxu0 %v455
    %584 = vmatpush.bf16.msra.mxu0 %v454
    %585 = vmatpush.bf16.msra.mxu0 %v453
    %586 = vmatpush.bf16.msra.mxu0 %v452
    %587 = vmatpush.bf16.msra.mxu0 %v451
    %588 = vmatpush.bf16.msra.mxu0 %v450
    %589 = vmatpush.bf16.msra.mxu0 %v449
    %590 = vmatmul.bf16.gmra.mxu0 %v178
    %v591 = vpop.f32.mrf.mxu0
    %v592 = vadd.f32 %v579, %v591
    %v593 = vpop.f32.mrf.mxu0
    %594 = vdwg.mxu0
    %595 = vmatpush.bf16.msra.mxu0 %v464
    %596 = vmatpush.bf16.msra.mxu0 %v463
    %597 = vmatpush.bf16.msra.mxu0 %v462
    %598 = vmatpush.bf16.msra.mxu0 %v461
    %599 = vmatpush.bf16.msra.mxu0 %v460
    %600 = vmatpush.bf16.msra.mxu0 %v459
    %601 = vmatpush.bf16.msra.mxu0 %v458
    %602 = vmatpush.bf16.msra.mxu0 %v457
    %603 = vmatmul.bf16.gmra.mxu0 %v179
    %v604 = vpop.f32.mrf.mxu0
    %v605 = vadd.f32 %v592, %v604
    %v606 = vpop.f32.mrf.mxu0
    %607 = vdwg.mxu0
    %608 = vmatpush.bf16.msra.mxu0 %v472
    %609 = vmatpush.bf16.msra.mxu0 %v471
    %610 = vmatpush.bf16.msra.mxu0 %v470
    %611 = vmatpush.bf16.msra.mxu0 %v469
    %612 = vmatpush.bf16.msra.mxu0 %v468
    %613 = vmatpush.bf16.msra.mxu0 %v467
    %614 = vmatpush.bf16.msra.mxu0 %v466
    %615 = vmatpush.bf16.msra.mxu0 %v465
    %616 = vmatmul.bf16.gmra.mxu0 %v180
    %v617 = vpop.f32.mrf.mxu0
    %v618 = vadd.f32 %v605, %v617
    %v619 = vpop.f32.mrf.mxu0
    %620 = vdwg.mxu0
    %621 = vmatpush.bf16.msra.mxu0 %v480
    %622 = vmatpush.bf16.msra.mxu0 %v479
    %623 = vmatpush.bf16.msra.mxu0 %v478
    %624 = vmatpush.bf16.msra.mxu0 %v477
    %625 = vmatpush.bf16.msra.mxu0 %v476
    %626 = vmatpush.bf16.msra.mxu0 %v475
    %627 = vmatpush.bf16.msra.mxu0 %v474
    %628 = vmatpush.bf16.msra.mxu0 %v473
    %629 = vmatmul.bf16.gmra.mxu0 %v181
    %v630 = vpop.f32.mrf.mxu0
    %v631 = vadd.f32 %v618, %v630
    %v632 = vpop.f32.mrf.mxu0
    %633 = vdwg.mxu0
    %634 = vmatpush.bf16.msra.mxu0 %v488
    %635 = vmatpush.bf16.msra.mxu0 %v487
    %636 = vmatpush.bf16.msra.mxu0 %v486
    %637 = vmatpush.bf16.msra.mxu0 %v485
    %638 = vmatpush.bf16.msra.mxu0 %v484
    %639 = vmatpush.bf16.msra.mxu0 %v483
    %640 = vmatpush.bf16.msra.mxu0 %v482
    %641 = vmatpush.bf16.msra.mxu0 %v481
    %642 = vmatmul.bf16.gmra.mxu0 %v182
    %v643 = vpop.f32.mrf.mxu0
    %v644 = vadd.f32 %v631, %v643
    %v645 = vpop.f32.mrf.mxu0
    %646 = vdwg.mxu0
    %647 = vmatpush.bf16.msra.mxu0 %v496
    %648 = vmatpush.bf16.msra.mxu0 %v495
    %649 = vmatpush.bf16.msra.mxu0 %v494
    %650 = vmatpush.bf16.msra.mxu0 %v493
    %651 = vmatpush.bf16.msra.mxu0 %v492
    %652 = vmatpush.bf16.msra.mxu0 %v491
    %653 = vmatpush.bf16.msra.mxu0 %v490
    %654 = vmatpush.bf16.msra.mxu0 %v489
    %655 = vmatmul.bf16.gmra.mxu0 %v183
    %v656 = vpop.f32.mrf.mxu0
    %v657 = vadd.f32 %v644, %v656
    %v658 = vpop.f32.mrf.mxu0
    %659 = vdwg.mxu0
    %660 = vmatpush.bf16.msra.mxu0 %v504
    %661 = vmatpush.bf16.msra.mxu0 %v503
    %662 = vmatpush.bf16.msra.mxu0 %v502
    %663 = vmatpush.bf16.msra.mxu0 %v501
    %664 = vmatpush.bf16.msra.mxu0 %v500
    %665 = vmatpush.bf16.msra.mxu0 %v499
    %666 = vmatpush.bf16.msra.mxu0 %v498
    %667 = vmatpush.bf16.msra.mxu0 %v497
    %668 = vmatmul.bf16.gmra.mxu0 %v184
    %v669 = vpop.f32.mrf.mxu0
    %v670 = vadd.f32 %v657, %v669
    %v671 = vpop.f32.mrf.mxu0
    %672 = vdwg.mxu0
    %v673 = vadd.f32 %v168, %v670
    %vm674 = vcmask 130048
    %675 = vst.msk [vmem:[%s7] sm:$0xff] %vm674, %v673
    %v676 = vld [vmem:[%s8] sm:$0xff]
    %v677 = vld [vmem:[%s1] sm:$0xff]
    %v678 = vld [vmem:[%s1 + $0x8] sm:$0xff]
    %v679 = vld [vmem:[%s1 + $0x10] sm:$0xff]
    %v680 = vld [vmem:[%s1 + $0x18] sm:$0xff]
    %v681 = vld [vmem:[%s1 + $0x20] sm:$0xff]
    %v682 = vld [vmem:[%s1 + $0x28] sm:$0xff]
    %v683 = vld [vmem:[%s1 + $0x30] sm:$0xff]
    %v684 = vld [vmem:[%s1 + $0x38] sm:$0xff]
    %v685 = vpack.c.bf16 %v677, %v677
    %v686 = vpack.c.bf16 %v678, %v678
    %v687 = vpack.c.bf16 %v679, %v679
    %v688 = vpack.c.bf16 %v680, %v680
    %v689 = vpack.c.bf16 %v681, %v681
    %v690 = vpack.c.bf16 %v682, %v682
    %v691 = vpack.c.bf16 %v683, %v683
    %v692 = vpack.c.bf16 %v684, %v684
    %693 = vmatpush.bf16.msra.mxu0 %v448
    %694 = vmatpush.bf16.msra.mxu0 %v447
    %695 = vmatpush.bf16.msra.mxu0 %v446
    %696 = vmatpush.bf16.msra.mxu0 %v445
    %697 = vmatpush.bf16.msra.mxu0 %v444
    %698 = vmatpush.bf16.msra.mxu0 %v443
    %699 = vmatpush.bf16.msra.mxu0 %v442
    %700 = vmatpush.bf16.msra.mxu0 %v441
    %701 = vmatmul.bf16.gmra.mxu0 %v685
    %v702 = vpop.f32.mrf.mxu0
    %v703 = vadd.f32 0.0, %v702
    %v704 = vpop.f32.mrf.mxu0
    %705 = vdwg.mxu0
    %706 = vmatpush.bf16.msra.mxu0 %v456
    %707 = vmatpush.bf16.msra.mxu0 %v455
    %708 = vmatpush.bf16.msra.mxu0 %v454
    %709 = vmatpush.bf16.msra.mxu0 %v453
    %710 = vmatpush.bf16.msra.mxu0 %v452
    %711 = vmatpush.bf16.msra.mxu0 %v451
    %712 = vmatpush.bf16.msra.mxu0 %v450
    %713 = vmatpush.bf16.msra.mxu0 %v449
    %714 = vmatmul.bf16.gmra.mxu0 %v686
    %v715 = vpop.f32.mrf.mxu0
    %v716 = vadd.f32 %v703, %v715
    %v717 = vpop.f32.mrf.mxu0
    %718 = vdwg.mxu0
    %719 = vmatpush.bf16.msra.mxu0 %v464
    %720 = vmatpush.bf16.msra.mxu0 %v463
    %721 = vmatpush.bf16.msra.mxu0 %v462
    %722 = vmatpush.bf16.msra.mxu0 %v461
    %723 = vmatpush.bf16.msra.mxu0 %v460
    %724 = vmatpush.bf16.msra.mxu0 %v459
    %725 = vmatpush.bf16.msra.mxu0 %v458
    %726 = vmatpush.bf16.msra.mxu0 %v457
    %727 = vmatmul.bf16.gmra.mxu0 %v687
    %v728 = vpop.f32.mrf.mxu0
    %v729 = vadd.f32 %v716, %v728
    %v730 = vpop.f32.mrf.mxu0
    %731 = vdwg.mxu0
    %732 = vmatpush.bf16.msra.mxu0 %v472
    %733 = vmatpush.bf16.msra.mxu0 %v471
    %734 = vmatpush.bf16.msra.mxu0 %v470
    %735 = vmatpush.bf16.msra.mxu0 %v469
    %736 = vmatpush.bf16.msra.mxu0 %v468
    %737 = vmatpush.bf16.msra.mxu0 %v467
    %738 = vmatpush.bf16.msra.mxu0 %v466
    %739 = vmatpush.bf16.msra.mxu0 %v465
    %740 = vmatmul.bf16.gmra.mxu0 %v688
    %v741 = vpop.f32.mrf.mxu0
    %v742 = vadd.f32 %v729, %v741
    %v743 = vpop.f32.mrf.mxu0
    %744 = vdwg.mxu0
    %745 = vmatpush.bf16.msra.mxu0 %v480
    %746 = vmatpush.bf16.msra.mxu0 %v479
    %747 = vmatpush.bf16.msra.mxu0 %v478
    %748 = vmatpush.bf16.msra.mxu0 %v477
    %749 = vmatpush.bf16.msra.mxu0 %v476
    %750 = vmatpush.bf16.msra.mxu0 %v475
    %751 = vmatpush.bf16.msra.mxu0 %v474
    %752 = vmatpush.bf16.msra.mxu0 %v473
    %753 = vmatmul.bf16.gmra.mxu0 %v689
    %v754 = vpop.f32.mrf.mxu0
    %v755 = vadd.f32 %v742, %v754
    %v756 = vpop.f32.mrf.mxu0
    %757 = vdwg.mxu0
    %758 = vmatpush.bf16.msra.mxu0 %v488
    %759 = vmatpush.bf16.msra.mxu0 %v487
    %760 = vmatpush.bf16.msra.mxu0 %v486
    %761 = vmatpush.bf16.msra.mxu0 %v485
    %762 = vmatpush.bf16.msra.mxu0 %v484
    %763 = vmatpush.bf16.msra.mxu0 %v483
    %764 = vmatpush.bf16.msra.mxu0 %v482
    %765 = vmatpush.bf16.msra.mxu0 %v481
    %766 = vmatmul.bf16.gmra.mxu0 %v690
    %v767 = vpop.f32.mrf.mxu0
    %v768 = vadd.f32 %v755, %v767
    %v769 = vpop.f32.mrf.mxu0
    %770 = vdwg.mxu0
    %771 = vmatpush.bf16.msra.mxu0 %v496
    %772 = vmatpush.bf16.msra.mxu0 %v495
    %773 = vmatpush.bf16.msra.mxu0 %v494
    %774 = vmatpush.bf16.msra.mxu0 %v493
    %775 = vmatpush.bf16.msra.mxu0 %v492
    %776 = vmatpush.bf16.msra.mxu0 %v491
    %777 = vmatpush.bf16.msra.mxu0 %v490
    %778 = vmatpush.bf16.msra.mxu0 %v489
    %779 = vmatmul.bf16.gmra.mxu0 %v691
    %v780 = vpop.f32.mrf.mxu0
    %v781 = vadd.f32 %v768, %v780
    %v782 = vpop.f32.mrf.mxu0
    %783 = vdwg.mxu0
    %784 = vmatpush.bf16.msra.mxu0 %v504
    %785 = vmatpush.bf16.msra.mxu0 %v503
    %786 = vmatpush.bf16.msra.mxu0 %v502
    %787 = vmatpush.bf16.msra.mxu0 %v501
    %788 = vmatpush.bf16.msra.mxu0 %v500
    %789 = vmatpush.bf16.msra.mxu0 %v499
    %790 = vmatpush.bf16.msra.mxu0 %v498
    %791 = vmatpush.bf16.msra.mxu0 %v497
    %792 = vmatmul.bf16.gmra.mxu0 %v692
    %v793 = vpop.f32.mrf.mxu0
    %v794 = vadd.f32 %v781, %v793
    %v795 = vpop.f32.mrf.mxu0
    %796 = vdwg.mxu0
    %v797 = vadd.f32 %v676, %v794
    %798 = vst.msk [vmem:[%s8] sm:$0xff] %vm674, %v797
    // Predicated region
    $region34: #{siam_ul_forward.1} parent=1 // pred_check
      %p799 = pneg %p33
    $region35: #{siam_ul_forward.1} parent=1 // pred_check_branch
      %801 = sbr.rel (%p799) target = $region37
    $region36: #{siam_ul_forward.1} parent=1 // pred_region
      %v802 = vld [vmem:[%s3] sm:$0xf]
      %v803 = vld [vmem:[%s3 + $0x4] sm:$0xf]
      %v804 = vld [vmem:[%s6] sm:$0xf]
      %v805 = vld [vmem:[%s6 + $0x4] sm:$0xf]
      %v806 = vld [vmem:[%s6 + $0x8] sm:$0xf]
      %v807 = vld [vmem:[%s6 + $0xc] sm:$0xf]
      %v808 = vld [vmem:[%s6 + $0x10] sm:$0xf]
      %v809 = vld [vmem:[%s6 + $0x14] sm:$0xf]
      %v810 = vld [vmem:[%s6 + $0x18] sm:$0xf]
      %v811 = vld [vmem:[%s6 + $0x1c] sm:$0xf]
      %v812 = vld [vmem:[%s4] sm:$0x1]
      %v813 = vld [vmem:[%s5] sm:$0x1]
      %v814 = vld [vmem:[%s7] sm:$0xff]
      %v815 = vpack.c.bf16 %v814, %v814
      %v818 = vunpack.c.l.b16 %v802
      %v819 = vunpack.c.l.b16 %v803
      %v820 = vpack.c.b16 %v819, %v818
      %v823 = vsel %vm674, %v815, 0
      %825 = vmatpush.bf16.msra.mxu0 0
      %826 = vmatpush.bf16.msra.mxu0 0
      %827 = vmatpush.bf16.msra.mxu0 0
      %828 = vmatpush.bf16.msra.mxu0 0
      %829 = vmatpush.bf16.msra.mxu0 0
      %830 = vmatpush.bf16.msra.mxu0 0
      %831 = vmatpush.bf16.msra.mxu0 0
      %832 = vmatpush.bf16.msra.mxu0 %v820
      %833 = vmatmul.bf16.gmra.mxu0 %v823
      %v834 = vpop.f32.mrf.mxu0
      %v835 = vadd.f32 0.0, %v834
      %v836 = vpop.f32.mrf.mxu0
      %837 = vdwg.mxu0
      %vm838 = vcmask 523264
      %v839 = vsel %vm838, %v835, 0.0
      %v840 = vrot.slane %v839, 4
      %v841 = vadd.f32 %v839, %v840
      %v842 = vrot.slane %v841, 2
      %v843 = vadd.f32 %v841, %v842
      %v844 = vrot.slane %v843, 1
      %v845 = vadd.f32 %v843, %v844
      %v846 = vrcp.pop 8.0
      %v847 = vmul.f32 8.0, %v846
      %v848 = vsub.f32 1.0, %v847
      %v849 = vmul.f32 %v846, %v848
      %v850 = vadd.f32 %v846, %v849
      %vm851 = vweird.f32 %v846
      %v852 = vsel %vm851, %v846, %v850
      %v853 = vmul.f32 %v845, %v852
      %v854 = vsub.f32 %v835, %v853
      %v855 = vmul.f32 %v854, %v854
      %v856 = vsel %vm838, %v855, 0.0
      %v857 = vrot.slane %v856, 4
      %v858 = vadd.f32 %v856, %v857
      %v859 = vrot.slane %v858, 2
      %v860 = vadd.f32 %v858, %v859
      %v861 = vrot.slane %v860, 1
      %v862 = vadd.f32 %v860, %v861
      %v863 = vmul.f32 %v862, %v852
      %v864 = vadd.f32 %v863, 1e-05
      %v865 = vrsqrt.pop %v864
      %v866 = vmul.f32 %v865, %v864
      %v867 = vmul.f32 %v866, %v865
      %v868 = vmul.f32 0.5, %v867
      %v869 = vsub.f32 1.5, %v868
      %v870 = vmul.f32 %v865, %v869
      %vm871 = vweird.f32 %v864
      %vm872 = vweird.f32 %v865
      %vm873 = vmor %vm871, %vm872
      %v874 = vsel %vm873, %v865, %v870
      %v875 = vmul.f32 %v812, %v874
      %v877 = vperm.slane %v875, 0
      %v879 = vmul.f32 %v854, %v877
      %v881 = vperm.slane %v813, 0
      %v883 = vadd.f32 %v879, %v881
      %v884 = vmax.f32 %v883, 0.0
      %v885 = vpack.c.bf16 %v884, %v884
      %v894 = vunpack.c.l.b16 %v804
      %v895 = vunpack.c.l.b16 %v805
      %v896 = vunpack.c.l.b16 %v806
      %v897 = vunpack.c.l.b16 %v807
      %v898 = vunpack.c.l.b16 %v808
      %v899 = vunpack.c.l.b16 %v809
      %v900 = vunpack.c.l.b16 %v810
      %v901 = vunpack.c.l.b16 %v811
      %v902 = vpack.c.b16 %v895, %v894
      %v903 = vpack.c.b16 %v897, %v896
      %v904 = vpack.c.b16 %v899, %v898
      %v905 = vpack.c.b16 %v901, %v900
      %v911 = vsel %vm838, %v885, 0
      %913 = vmatpush.bf16.msra.mxu0 0
      %914 = vmatpush.bf16.msra.mxu0 0
      %915 = vmatpush.bf16.msra.mxu0 0
      %916 = vmatpush.bf16.msra.mxu0 0
      %917 = vmatpush.bf16.msra.mxu0 %v905
      %918 = vmatpush.bf16.msra.mxu0 %v904
      %919 = vmatpush.bf16.msra.mxu0 %v903
      %920 = vmatpush.bf16.msra.mxu0 %v902
      %921 = vmatmul.bf16.gmra.mxu0 %v911
      %v922 = vpop.f32.mrf.mxu0
      %v923 = vadd.f32 0.0, %v922
      %v924 = vpop.f32.mrf.mxu0
      %925 = vdwg.mxu0
      %926 = vst.msk [vmem:[#allocation2] sm:$0xff] %vm674, %v923
      %v927 = vld [vmem:[%s8] sm:$0xff]
      %v928 = vpack.c.bf16 %v927, %v927
      %v930 = vsel %vm674, %v928, 0
      %932 = vmatpush.bf16.msra.mxu0 0
      %933 = vmatpush.bf16.msra.mxu0 0
      %934 = vmatpush.bf16.msra.mxu0 0
      %935 = vmatpush.bf16.msra.mxu0 0
      %936 = vmatpush.bf16.msra.mxu0 0
      %937 = vmatpush.bf16.msra.mxu0 0
      %938 = vmatpush.bf16.msra.mxu0 0
      %939 = vmatpush.bf16.msra.mxu0 %v820
      %940 = vmatmul.bf16.gmra.mxu0 %v930
      %v941 = vpop.f32.mrf.mxu0
      %v942 = vadd.f32 0.0, %v941
      %v943 = vpop.f32.mrf.mxu0
      %944 = vdwg.mxu0
      %v945 = vsel %vm838, %v942, 0.0
      %v946 = vrot.slane %v945, 4
      %v947 = vadd.f32 %v945, %v946
      %v948 = vrot.slane %v947, 2
      %v949 = vadd.f32 %v947, %v948
      %v950 = vrot.slane %v949, 1
      %v951 = vadd.f32 %v949, %v950
      %v952 = vmul.f32 %v951, %v852
      %v953 = vsub.f32 %v942, %v952
      %v954 = vmul.f32 %v953, %v953
      %v955 = vsel %vm838, %v954, 0.0
      %v956 = vrot.slane %v955, 4
      %v957 = vadd.f32 %v955, %v956
      %v958 = vrot.slane %v957, 2
      %v959 = vadd.f32 %v957, %v958
      %v960 = vrot.slane %v959, 1
      %v961 = vadd.f32 %v959, %v960
      %v962 = vmul.f32 %v961, %v852
      %v963 = vadd.f32 %v962, 1e-05
      %v964 = vrsqrt.pop %v963
      %v965 = vmul.f32 %v964, %v963
      %v966 = vmul.f32 %v965, %v964
      %v967 = vmul.f32 0.5, %v966
      %v968 = vsub.f32 1.5, %v967
      %v969 = vmul.f32 %v964, %v968
      %vm970 = vweird.f32 %v963
      %vm971 = vweird.f32 %v964
      %vm972 = vmor %vm970, %vm971
      %v973 = vsel %vm972, %v964, %v969
      %v974 = vmul.f32 %v812, %v973
      %v976 = vperm.slane %v974, 0
      %v978 = vmul.f32 %v953, %v976
      %v979 = vadd.f32 %v978, %v881
      %v980 = vmax.f32 %v979, 0.0
      %v981 = vpack.c.bf16 %v980, %v980
      %v983 = vsel %vm838, %v981, 0
      %985 = vmatpush.bf16.msra.mxu0 0
      %986 = vmatpush.bf16.msra.mxu0 0
      %987 = vmatpush.bf16.msra.mxu0 0
      %988 = vmatpush.bf16.msra.mxu0 0
      %989 = vmatpush.bf16.msra.mxu0 %v905
      %990 = vmatpush.bf16.msra.mxu0 %v904
      %991 = vmatpush.bf16.msra.mxu0 %v903
      %992 = vmatpush.bf16.msra.mxu0 %v902
      %993 = vmatmul.bf16.gmra.mxu0 %v983
      %v994 = vpop.f32.mrf.mxu0
      %v995 = vadd.f32 0.0, %v994
      %v996 = vpop.f32.mrf.mxu0
      %997 = vdwg.mxu0
      %998 = vst.msk [vmem:[#allocation4] sm:$0xff] %vm674, %v995
    $region37: #{siam_ul_forward.1} parent=1 // pred_fallthru
      _
    // Predicated region
    $region38: #{siam_ul_forward.1} parent=1 // pred_check
      _
    $region39: #{siam_ul_forward.1} parent=1 // pred_check_branch
      %1000 = sbr.rel (0) target = $region41
    $region40: #{siam_ul_forward.1} parent=1 // pred_region
      _
    $region41: #{siam_ul_forward.1} parent=1 // pred_fallthru
      _
    // Predicated region
    $region42: #{siam_ul_forward.1} parent=1 // pred_check
      _
    $region43: #{siam_ul_forward.1} parent=1 // pred_check_branch
      %1002 = sbr.rel (0) target = $region45
    $region44: #{siam_ul_forward.1} parent=1 // pred_region
      _
    $region45: #{siam_ul_forward.1} parent=1 // pred_fallthru
      _
    // Predicated region
    $region46: #{siam_ul_forward.1} parent=1 // pred_check
      _
    $region47: #{siam_ul_forward.1} parent=1 // pred_check_branch
      %1004 = sbr.rel (0) target = $region49
    $region48: #{siam_ul_forward.1} parent=1 // pred_region
      %1006 = vsyncadd [#allocation3], 0
      %s1008 = sshll.u32 [#allocation2], 4
      %s1009 = int_to_ptr.vmem [resolvable:$true] %s1008
      %s1010 = sshll.u32 %s9, 4
      %s1011 = int_to_ptr.hbm [resolvable:$true] %s1010
      %1013 = dma.vmem_to_hbm [thread:$0]  %s1009, 128, %s1011, [#allocation3]
    $region49: #{siam_ul_forward.1} parent=1 // pred_fallthru
      _
    // Predicated region
    $region50: #{siam_ul_forward.1} parent=1 // pred_check
      _
    $region51: #{siam_ul_forward.1} parent=1 // pred_check_branch
      %1015 = sbr.rel (0) target = $region53
    $region52: #{siam_ul_forward.1} parent=1 // pred_region
      %1017 = vsyncadd [#allocation5], 0
      %s1019 = sshll.u32 [#allocation4], 4
      %s1020 = int_to_ptr.vmem [resolvable:$true] %s1019
      %s1021 = sshll.u32 %s10, 4
      %s1022 = int_to_ptr.hbm [resolvable:$true] %s1021
      %1024 = dma.vmem_to_hbm [thread:$0]  %s1020, 128, %s1022, [#allocation5]
    $region53: #{siam_ul_forward.1} parent=1 // pred_fallthru
      _
    // Predicated region
    $region54: #{siam_ul_forward.1} parent=1 // pred_check
      _
    $region55: #{siam_ul_forward.1} parent=1 // pred_check_branch
      %1026 = sbr.rel (0) target = $region57
    $region56: #{siam_ul_forward.1} parent=1 // pred_region
      _
    $region57: #{siam_ul_forward.1} parent=1 // pred_fallthru
      _
    // Predicated region
    $region58: #{siam_ul_forward.1} parent=1 // pred_check
      _
    $region59: #{siam_ul_forward.1} parent=1 // pred_check_branch
      %1028 = sbr.rel (0) target = $region61
    $region60: #{siam_ul_forward.1} parent=1 // pred_region
      _
    $region61: #{siam_ul_forward.1} parent=1 // pred_fallthru
      _
    // Predicated region
    $region62: #{siam_ul_forward.1} parent=1 // pred_check
      _
    $region63: #{siam_ul_forward.1} parent=1 // pred_check_branch
      %1030 = sbr.rel (0) target = $region65
    $region64: #{siam_ul_forward.1} parent=1 // pred_region
      %1032 = dma.done [#allocation3], 128
    $region65: #{siam_ul_forward.1} parent=1 // pred_fallthru
      _
    // Predicated region
    $region66: #{siam_ul_forward.1} parent=1 // pred_check
      _
    $region67: #{siam_ul_forward.1} parent=1 // pred_check_branch
      %1034 = sbr.rel (0) target = $region69
    $region68: #{siam_ul_forward.1} parent=1 // pred_region
      %1036 = dma.done [#allocation5], 128
    $region69: #{siam_ul_forward.1} parent=1 // pred_fallthru
      _
    %1037 = vsyncpa [#allocation3], 1
    %1038 = vsyncpa [#allocation5], 1

</llo_original>
